<compile_context>
chip_gen: v5e
topology: v5e:2x2
jax: 0.10.0
libtpu: 0.0.40
codegen_flags: <defaults>
</compile_context>

<pallas_src>
import functools

import jax
import jax.numpy as jnp
from jax import lax
from jax.experimental import pallas as pl
from jax.experimental.pallas import tpu as pltpu


LANES = 128


# ----------------------------------------------------------------------------- kernel
def _smoothlife_kernel(x_ref, o_ref, *, r_a: float, r_i: float, compute_dtype):
    # x_ref / o_ref: VMEM (block_rows, 128) in the input's native dtype.
    in_dt = x_ref.dtype
    cdt = jnp.dtype(compute_dtype)
    # Round thresholds to the input dtype (bit-matches a native-dtype compare),
    # then compare in the chosen compute dtype (native bf16 on v6e/v7x, f32 else).
    ri = jnp.asarray(r_i, dtype=in_dt).astype(cdt)
    ra = jnp.asarray(r_a, dtype=in_dt).astype(cdt)
    x = x_ref[...]
    if x.dtype != cdt:
        x = x.astype(cdt)
    # "set 1 where x >= r_i, then force 0 where x > r_a"  ==  band indicator.
    inside = jnp.logical_and(x >= ri, x <= ra)
    o_ref[...] = inside.astype(o_ref.dtype)          # bool -> {0, 1} in output dtype


# ----------------------------------------------------------------------------- helpers
def _sublane_quantum(dtype) -> int:
    # f32 -> 8 sublanes, bf16/f16 -> 16, int8/fp8 -> 32 (packing quantum).
    itemsize = jnp.dtype(dtype).itemsize
    return max(8, 8 * (4 // max(itemsize, 1)))


def _device_kind() -> str:
    try:
        return jax.devices()[0].device_kind.lower()
    except Exception:
        return ""


def _pick_block_rows(rows: int, sub: int, target_rows: int, want_multicore: bool) -> int:
    """Largest sublane-aligned row-block <= target; on v7x keep the grid even & >=4."""
    if rows <= sub:
        return rows                               # single full-dim block (exempt from (8,128))
    max_aligned = max(sub, (rows // sub) * sub)
    tr = max(sub, min((target_rows // sub) * sub, max_aligned))
    if want_multicore and rows >= 4 * sub:
        g = pl.cdiv(rows, tr)
        want = max(4, g + (g % 2))                # even and >= 4 grid steps for 2 TCs
        if want != g:
            tr = max(sub, ((pl.cdiv(rows, want) + sub - 1) // sub) * sub)
    return tr


# ----------------------------------------------------------------------------- pallas path
def _smoothlife_pallas_2d(x2d, r_a: float, r_i: float, tile_rows=None):
    rows, _ = x2d.shape
    dtype = x2d.dtype
    itemsize = jnp.dtype(dtype).itemsize
    sub = _sublane_quantum(dtype)

    kind = _device_kind()
    is_v5e = ("v5 lite" in kind) or ("v5e" in kind) or ("v5lite" in kind)
    is_v6_or_v7 = ("v6" in kind) or ("v7" in kind) or ("tpu7" in kind)
    is_v7 = ("v7" in kind) or ("tpu7" in kind)

    # ~4 MiB per buffer (3 MiB on v5e) -> 4 double-buffered buffers stay well under
    # every generation's scoped-VMEM budget while amortizing the ~0.35us/step overhead.
    if tile_rows is None:
        target_bytes = (3 << 20) if is_v5e else (4 << 20)
        target_rows = max(sub, target_bytes // (LANES * itemsize))
    else:
        target_rows = max(sub, int(tile_rows))

    tr = _pick_block_rows(rows, sub, target_rows, want_multicore=is_v7)
    grid = (pl.cdiv(rows, tr),)

    block_bytes = tr * LANES * itemsize
    # in + out, each double-buffered, plus headroom for compiler-internal scratch.
    vmem_limit = max(16 << 20, 4 * block_bytes + (2 << 20))

    # Native sub-32-bit compute only on chips with bf16 VALU support (v6e/v7x);
    # f32 compute everywhere else (safe on v5e, identical results).
    compute_dtype = dtype if (itemsize < 4 and is_v6_or_v7) else jnp.float32

    n_elems = rows * LANES
    cost = pl.CostEstimate(
        flops=4 * n_elems,                      # 2 compares + and + select-ish per element
        transcendentals=0,
        bytes_accessed=2 * n_elems * itemsize,  # one read + one write, native dtype
    )

    kernel = functools.partial(
        _smoothlife_kernel, r_a=float(r_a), r_i=float(r_i), compute_dtype=compute_dtype)

    return pl.pallas_call(
        kernel,
        out_shape=jax.ShapeDtypeStruct((rows, LANES), dtype),
        grid_spec=pl.GridSpec(
            grid=grid,
            in_specs=[pl.BlockSpec((tr, LANES), lambda i: (i, 0))],
            out_specs=pl.BlockSpec((tr, LANES), lambda i: (i, 0)),
        ),
        compiler_params=pltpu.CompilerParams(
            dimension_semantics=("parallel",),
            vmem_limit_bytes=int(vmem_limit),
        ),
        cost_estimate=cost,
    )(x2d)


# ----------------------------------------------------------------------------- public API
def smoothlife_forward(x, r_a: float = 1.0, r_i: float = 1.0 / 3.0,
                       tile_rows=None, min_pallas_elems: int = 1 << 18):
    """SmoothLife band mask: 1.0 where r_i <= x <= r_a, else 0.0 (same shape/dtype as x)."""
    n = int(x.size)
    dtype = x.dtype

    # Tiny tensors / non-float dtypes: the pallas_call boundary would only add overhead
    # and block XLA fusion -- use the trivially-fusable pure-JAX expression instead.
    if n < max(int(min_pallas_elems), 1) or not jnp.issubdtype(dtype, jnp.floating):
        return smoothlife_reference(x, r_a=r_a, r_i=r_i)

    flat = x.reshape(-1)                      # free for contiguous inputs
    n_main = (n // LANES) * LANES
    rows = n_main // LANES

    if n_main == 0:
        return smoothlife_reference(x, r_a=r_a, r_i=r_i)

    if n_main == n:
        # Common case (e.g. NCHW activations): zero-copy lane-dense view.
        out2d = _smoothlife_pallas_2d(flat.reshape(rows, LANES), r_a, r_i, tile_rows)
        return out2d.reshape(x.shape)

    # Unaligned flat size: Pallas on the 128-aligned prefix, plain jnp on the <128-elem
    # tail -- no full-array pad and no full-array output slice.
    main2d = lax.slice(flat, (0,), (n_main,)).reshape(rows, LANES)
    out_main = _smoothlife_pallas_2d(main2d, r_a, r_i, tile_rows).reshape(-1)
    tail_out = smoothlife_reference(lax.slice(flat, (n_main,), (n,)), r_a=r_a, r_i=r_i)
    return jnp.concatenate([out_main, tail_out]).reshape(x.shape)


def smoothlife_reference(x, r_a: float = 1.0, r_i: float = 1.0 / 3.0):
    """Pure-JAX reference matching the PyTorch forward exactly."""
    k = jnp.zeros_like(x)
    k = jnp.where(x >= r_i, jnp.ones_like(x), k)
    k = jnp.where(x > r_a, jnp.zeros_like(x), k)
    return k


# ----------------------------------------------------------------------------- demo / checks
if __name__ == "__main__":
    r_a = 1.0
    r_i = 1.0 / 3.0

    # NCHW activation-style input: batch=2, channels=4, 16x16 spatial (Pallas path forced).
    x = jax.random.normal(jax.random.PRNGKey(0), (2, 4, 16, 16), dtype=jnp.float32)
    out = jax.block_until_ready(smoothlife_forward(x, r_a=r_a, r_i=r_i, min_pallas_elems=0))
    ref = smoothlife_reference(x, r_a=r_a, r_i=r_i)
    assert out.shape == x.shape and out.dtype == x.dtype
    assert jnp.array_equal(out, ref), "mismatch vs reference (f32, pallas path)"

    # Small-input fallback path gives the identical answer.
    out_fb = jax.block_until_ready(smoothlife_forward(x, r_a=r_a, r_i=r_i))
    assert jnp.array_equal(out_fb, ref), "mismatch vs reference (fallback path)"

    # bf16 native-dtype streaming/compute path with a multi-step parallel grid.
    xb = jax.random.normal(jax.random.PRNGKey(1), (256, 1024), dtype=jnp.bfloat16)
    outb = jax.block_until_ready(
        smoothlife_forward(xb, r_a=r_a, r_i=r_i, tile_rows=64, min_pallas_elems=0))
    assert outb.shape == xb.shape and outb.dtype == jnp.bfloat16
    assert jnp.array_equal(outb, smoothlife_reference(xb, r_a=r_a, r_i=r_i)), \
        "mismatch vs reference (bf16)"

    # Ragged flat size (not a multiple of 128): aligned prefix via Pallas + jnp tail.
    xr = jax.random.normal(jax.random.PRNGKey(2), (1000,), dtype=jnp.float32)
    outr = jax.block_until_ready(
        smoothlife_forward(xr, r_a=r_a, r_i=r_i, min_pallas_elems=0))
    assert outr.shape == xr.shape and outr.dtype == xr.dtype
    assert jnp.array_equal(outr, smoothlife_reference(xr, r_a=r_a, r_i=r_i)), \
        "mismatch vs reference (ragged tail)"

    print("KERNEL_OK")
</pallas_src>

<mosaic_0001>
module attributes {stable_mosaic.version = 11 : i64} {
  func.func @_smoothlife_kernel(%arg0: i32, %arg1: memref<16x128xf32, #tpu.memory_space<vmem>>, %arg2: memref<16x128xf32, #tpu.memory_space<vmem>>) attributes {dimension_semantics = [#tpu.dimension_semantics<parallel>], iteration_bounds = array<i64: 1>, scalar_prefetch = 0 : i64, scratch_operands = 0 : i64, tpu.core_type = #tpu.core_type<tc>, window_params = [{transform_indices = @transform_0, window_bounds = array<i64: 16, 128>}, {transform_indices = @transform_1, window_bounds = array<i64: 16, 128>}]} {
    %c0 = arith.constant 0 : index
    %c0_0 = arith.constant 0 : index
    %0 = vector.load %arg1[%c0, %c0_0] : memref<16x128xf32, #tpu.memory_space<vmem>>, vector<16x128xf32>
    %cst = arith.constant 0.333333343 : f32
    %1 = vector.broadcast %cst : f32 to vector<16x128xf32>
    %2 = arith.cmpf oge, %0, %1 : vector<16x128xf32>
    %cst_1 = arith.constant 1.000000e+00 : f32
    %3 = vector.broadcast %cst_1 : f32 to vector<16x128xf32>
    %4 = arith.cmpf ole, %0, %3 : vector<16x128xf32>
    %5 = arith.andi %2, %4 : vector<16x128xi1>
    %6 = arith.extui %5 : vector<16x128xi1> to vector<16x128xi32>
    %7 = arith.sitofp %6 : vector<16x128xi32> to vector<16x128xf32>
    %c0_2 = arith.constant 0 : index
    %c0_3 = arith.constant 0 : index
    %8 = vector.load %arg2[%c0_2, %c0_3] : memref<16x128xf32, #tpu.memory_space<vmem>>, vector<16x128xf32>
    tpu.vector_store %arg2[%c0_2, %c0_3], %7 {strides = array<i32>} : memref<16x128xf32, #tpu.memory_space<vmem>>, vector<16x128xf32>,
    return
  }
  func.func @transform_0(%arg0: i32) -> (i32, i32) {
    %c0_i32 = arith.constant 0 : i32
    %c0_i32_0 = arith.constant 0 : i32
    return %arg0, %c0_i32 : i32, i32
  }
  func.func @transform_1(%arg0: i32) -> (i32, i32) {
    %c0_i32 = arith.constant 0 : i32
    %c0_i32_0 = arith.constant 0 : i32
    return %arg0, %c0_i32 : i32, i32
  }
}

</mosaic_0001>

<llo_original>
// kernel: tpu_custom_call.1
$region0: #{tpu_custom_call.1}
  #allocation0 [shape = 'u32[]', space=smem, size = 0x4, offset = 0x4, fixed_abs, tag = 'smem constant byte address 0x4 - core index']
  #allocation1 [shape = 'u32[72,128]{1,0:T(1,128)}', space=vmem, size = 0x9000, scoped, tag = 'internal scratch']
  %s0 = inlined_call_operand.hbm [shape: f32[16,128], index: 0, kind: input, shape index: {}]
  %s1 = inlined_call_operand.hbm [shape: f32[16,128], index: 1, kind: output, shape index: {}]
  %s2 = sld [smem:[#allocation0]]
  $region18: #{tpu_custom_call.1} parent=0
    _
  %s4 = ssub.s32 1, %s2
  %s5 = scalar_select 0, %s4, %s2
  $region1: #{tpu_custom_call.1} parent=0
    #allocation2 [shape = 'u8[8192]{0}', space=vmem, size = 0x2000, scoped, tag = 'input window, operand 0, single buffered']
    #allocation3 [shape = 's32[1]{0}', space=sflag, size = 0x4, scoped, tag = 'scoped memory for tpu_custom_call.1']
    #allocation4 [shape = 's32[1]{0}', space=sflag, size = 0x4, scoped, tag = 'scoped memory for tpu_custom_call.1']
    #allocation5 [shape = 'u8[8192]{0}', space=vmem, size = 0x2000, scoped, tag = 'output window, operand 0, single buffered']
    %6 = vsyncpa [#allocation3], 0
    %7 = vsyncpa [#allocation4], 0
    // Predicated region
    $region2: #{tpu_custom_call.1} parent=1 // pred_check
      _
    $region3: #{tpu_custom_call.1} parent=1 // pred_check_branch
      %9 = sbr.rel (0) target = $region5
    $region4: #{tpu_custom_call.1} parent=1 // pred_region
      %11 = vsyncadd [#allocation3], 0
      %s12 = sshll.u32 %s0, 4
      %s13 = int_to_ptr.hbm [resolvable:$true] %s12
      %s14 = sshll.u32 [#allocation2], 4
      %s15 = int_to_ptr.vmem [resolvable:$true] %s14
      %20 = dma.hbm_to_vmem [thread:$0]  %s13, 256, %s15, [#allocation3], 128, 128, 8
    $region5: #{tpu_custom_call.1} parent=1 // pred_fallthru
      _
    // Predicated region
    $region6: #{tpu_custom_call.1} parent=1 // pred_check
      _
    $region7: #{tpu_custom_call.1} parent=1 // pred_check_branch
      %22 = sbr.rel (0) target = $region9
    $region8: #{tpu_custom_call.1} parent=1 // pred_region
      %24 = dma.done [#allocation3], 256
    $region9: #{tpu_custom_call.1} parent=1 // pred_fallthru
      _
    %v25 = vld [vmem:[#allocation2] sm:$0xff]
    %v26 = vld [vmem:[#allocation2 + $0x8] sm:$0xff]
    %vm27 = vcmp.ge.f32.partialorder %v25, 0.33333334
    %vm28 = vcmp.ge.f32.partialorder %v26, 0.33333334
    %vm29 = vcmp.le.f32.partialorder %v25, 1.0
    %vm30 = vcmp.le.f32.partialorder %v26, 1.0
    %vm31 = vmand %vm27, %vm29
    %vm32 = vmand %vm28, %vm30
    %v33 = vsel %vm31, 1, 0
    %v34 = vsel %vm32, 1, 0
    %v35 = vcvt.s32.f32 %v33
    %v36 = vcvt.s32.f32 %v34
    %37 = vst [vmem:[#allocation5] sm:$0xff] %v35
    %38 = vst [vmem:[#allocation5 + $0x8] sm:$0xff] %v36
    // Predicated region
    $region10: #{tpu_custom_call.1} parent=1 // pred_check
      _
    $region11: #{tpu_custom_call.1} parent=1 // pred_check_branch
      %40 = sbr.rel (0) target = $region13
    $region12: #{tpu_custom_call.1} parent=1 // pred_region
      %42 = vsyncadd [#allocation4], 0
      %s43 = sshll.u32 [#allocation5], 4
      %s44 = int_to_ptr.vmem [resolvable:$true] %s43
      %s45 = sshll.u32 %s1, 4
      %s46 = int_to_ptr.hbm [resolvable:$true] %s45
      %51 = dma.vmem_to_hbm [thread:$0]  %s44, 256, %s46, [#allocation4], 128, 128, 8
    $region13: #{tpu_custom_call.1} parent=1 // pred_fallthru
      _
    // Predicated region
    $region14: #{tpu_custom_call.1} parent=1 // pred_check
      _
    $region15: #{tpu_custom_call.1} parent=1 // pred_check_branch
      %53 = sbr.rel (0) target = $region17
    $region16: #{tpu_custom_call.1} parent=1 // pred_region
      %55 = dma.done [#allocation4], 256
    $region17: #{tpu_custom_call.1} parent=1 // pred_fallthru
      _
    %56 = vsyncpa [#allocation3], 1
    %57 = vsyncpa [#allocation4], 1

</llo_original>
